<compile_context>
chip_gen: v5e
topology: v5e:2x2
jax: 0.10.0
libtpu: 0.0.40
codegen_flags: <defaults>
</compile_context>

<pallas_src>
import functools

import jax
import jax.numpy as jnp
from jax.experimental import pallas as pl
from jax.experimental.pallas import tpu as pltpu


def _round_up(x, m):
    return (x + m - 1) // m * m


def _vmem_budget_bytes():
    """~3/4 of physical VMEM; conservative 64 MiB (v7x) fallback."""
    try:
        cap = pltpu.get_tpu_info().vmem_capacity_bytes
    except Exception:
        cap = 64 * 2**20
    return (cap * 3) // 4


# --------------------------------------------------------------------------
# Path A: fused single-pass kernel, grid=(B,).
#   Loads the whole per-batch slab once, pools, runs the tiny FC stack with
#   VPU broadcast-multiplies + reductions (no tiny MXU matvecs), gates, stores.
# --------------------------------------------------------------------------
def _se_fused_kernel(x_ref, w1t_ref, w2_ref, o_ref, *, inv_hw):
    # x_ref: (1, C, HW), w1t_ref: (C, Cr) == w1.T, w2_ref: (C, Cr), o_ref: (1, C, HW)
    x = x_ref[0].astype(jnp.float32)                            # (C, HW)
    p = jnp.sum(x, axis=-1, keepdims=True) * inv_hw             # (C, 1)
    # h_j = relu(sum_c w1[j,c] * p[c])  -> (1, Cr)   (sublane reduce)
    h = jnp.maximum(jnp.sum(w1t_ref[...] * p, axis=0, keepdims=True), 0.0)
    # s_c = sigmoid(sum_j w2[c,j] * h[j]) -> (C, 1)  (lane reduce)
    z = jnp.sum(w2_ref[...] * h, axis=-1, keepdims=True)
    s = 1.0 / (1.0 + jnp.exp(-z))                               # (C, 1)
    o_ref[0] = (x * s).astype(o_ref.dtype)


# --------------------------------------------------------------------------
# Path B kernel 1: tiled global average pool (accumulator over spatial tiles).
# --------------------------------------------------------------------------
def _pool_kernel(x_ref, pooled_ref, *, hw, inv_hw, needs_mask):
    # x_ref: (1, C, THW) tile; pooled_ref: (1, C, 1) resident over the t axis.
    t = pl.program_id(1)

    @pl.when(t == 0)
    def _init():
        pooled_ref[...] = jnp.zeros_like(pooled_ref)

    x = x_ref[...].astype(jnp.float32)
    if needs_mask:
        thw = x.shape[-1]
        lane = jax.lax.broadcasted_iota(jnp.int32, x.shape, 2)
        x = jnp.where(t * thw + lane < hw, x, 0.0)
    pooled_ref[...] += jnp.sum(x, axis=-1, keepdims=True)

    @pl.when(t == pl.num_programs(1) - 1)
    def _finalize():
        pooled_ref[...] = pooled_ref[...] * inv_hw


# --------------------------------------------------------------------------
# Path B kernel 2: lane-dense gating (x * per-channel scale).
# --------------------------------------------------------------------------
def _gate_kernel(x_ref, s_ref, o_ref):
    # x_ref: (1, C, THW), s_ref: (1, C, 1) broadcast over lanes.
    o_ref[...] = (x_ref[...].astype(jnp.float32) * s_ref[...]).astype(o_ref.dtype)


def _spatial_tile(hw, c, itemsize, budget):
    """128-aligned spatial tile sized in bytes (~3 MiB blocks), VMEM-capped."""
    hw128 = _round_up(hw, 128)
    target_blk = 3 * 2**20
    thw = (target_blk // max(1, c * itemsize)) // 128 * 128
    # keep gate pass's ~(4 pipeline blocks + f32 temps) within the budget
    cap = (budget // max(1, 6 * c * itemsize)) // 128 * 128
    thw = min(thw, max(cap, 128))
    thw = max(128, min(thw, hw128))
    # NOTE: for extremely large C (C*128*itemsize > budget/6) a channel tile
    # would also be needed; not required for the shapes exercised here.
    return int(thw)


def se_layer(x, w1, w2, *, force_two_pass=False, spatial_tile=None):
    """SELayer forward.  x: [B, C, H, W].  w1: [C//r, C], w2: [C, C//r]
    (PyTorch Linear weights, bias=False).  Returns x * sigmoid(fc2(relu(fc1(mean(x)))))."""
    B, C, H, W = x.shape
    HW = H * W
    itemsize = jnp.dtype(x.dtype).itemsize
    xf = x.reshape(B, C, HW)                       # free view, no HBM copy
    w1t = jnp.asarray(w1, jnp.float32).T           # (C, Cr)
    w2f = jnp.asarray(w2, jnp.float32)             # (C, Cr)
    Cr = w1t.shape[1]
    budget = _vmem_budget_bytes()

    # ---- Path A: fused single pass (1R + 1W of x) --------------------------
    slab = C * HW * itemsize
    fused_need = 4 * slab + 2 * C * HW * 4 + 4 * C * Cr * 4   # pipeline bufs + f32 temps
    if (not force_two_pass) and fused_need <= budget:
        vmem_limit = int(min(budget, max(16 * 2**20, 2 * fused_need)))
        out = pl.pallas_call(
            functools.partial(_se_fused_kernel, inv_hw=1.0 / HW),
            out_shape=jax.ShapeDtypeStruct((B, C, HW), x.dtype),
            grid_spec=pltpu.PrefetchScalarGridSpec(
                num_scalar_prefetch=0,
                grid=(B,),
                in_specs=[
                    pl.BlockSpec((1, C, HW), lambda b: (b, 0, 0)),
                    pl.BlockSpec((C, Cr), lambda b: (0, 0)),
                    pl.BlockSpec((C, Cr), lambda b: (0, 0)),
                ],
                out_specs=pl.BlockSpec((1, C, HW), lambda b: (b, 0, 0)),
            ),
            compiler_params=pltpu.CompilerParams(
                dimension_semantics=("parallel",),
                vmem_limit_bytes=vmem_limit),
        )(xf, w1t, w2f)
        return out.reshape(B, C, H, W)

    # ---- Path B: two tiled passes (2R + 1W of x) ---------------------------
    if spatial_tile is not None:
        thw = max(128, _round_up(int(spatial_tile), 128))
    else:
        thw = _spatial_tile(HW, C, itemsize, budget)
    n_t = (HW + thw - 1) // thw
    blk = C * thw * itemsize
    vmem_limit = int(min(budget, max(8 * 2**20, 6 * blk)))
    needs_mask = (HW % thw) != 0

    pooled = pl.pallas_call(
        functools.partial(_pool_kernel, hw=HW, inv_hw=1.0 / HW,
                          needs_mask=needs_mask),
        out_shape=jax.ShapeDtypeStruct((B, C, 1), jnp.float32),
        grid_spec=pltpu.PrefetchScalarGridSpec(
            num_scalar_prefetch=0,
            grid=(B, n_t),
            in_specs=[pl.BlockSpec((1, C, thw), lambda b, t: (b, 0, t))],
            out_specs=pl.BlockSpec((1, C, 1), lambda b, t: (b, 0, 0)),
        ),
        compiler_params=pltpu.CompilerParams(
            dimension_semantics=("parallel", "arbitrary"),
            vmem_limit_bytes=vmem_limit),
    )(xf)

    # Tiny FC stack batched over B (negligible vs. the big mem-bound passes
    # that make us take this path; the small-problem case is fully fused above).
    p = pooled[:, :, 0]                              # (B, C)
    h = jax.nn.relu(p @ w1t)                         # (B, Cr)
    s = jax.nn.sigmoid(h @ w2f.T)                    # (B, C)
    s = s[:, :, None].astype(jnp.float32)            # (B, C, 1)

    out = pl.pallas_call(
        _gate_kernel,
        out_shape=jax.ShapeDtypeStruct((B, C, HW), x.dtype),
        grid_spec=pltpu.PrefetchScalarGridSpec(
            num_scalar_prefetch=0,
            grid=(B, n_t),
            in_specs=[
                pl.BlockSpec((1, C, thw), lambda b, t: (b, 0, t)),   # x tile
                pl.BlockSpec((1, C, 1), lambda b, t: (b, 0, 0)),     # scales
            ],
            out_specs=pl.BlockSpec((1, C, thw), lambda b, t: (b, 0, t)),
        ),
        compiler_params=pltpu.CompilerParams(
            dimension_semantics=("parallel", "parallel"),
            vmem_limit_bytes=vmem_limit),
    )(xf, s)

    return out.reshape(B, C, H, W)


def se_reference(x, w1, w2):
    """Pure-JAX reference mirroring the PyTorch SELayer.forward (f32 math)."""
    xf = x.astype(jnp.float32)
    pooled = jnp.mean(xf, axis=(2, 3))                    # (B, C)
    h = jax.nn.relu(pooled @ w1.T)                        # (B, C//r)
    s = jax.nn.sigmoid(h @ w2.T)                          # (B, C)
    return xf * s[:, :, None, None]


def make_params(key, channels, reduction=4):
    hidden = channels // reduction
    assert hidden > 0
    k1, k2 = jax.random.split(key)
    w1 = jax.random.normal(k1, (hidden, channels), jnp.float32) * 0.1
    w2 = jax.random.normal(k2, (channels, hidden), jnp.float32) * 0.1
    return w1, w2


if __name__ == "__main__":
    key = jax.random.PRNGKey(0)
    k_p, k_x1, k_x2, k_x3 = jax.random.split(key, 4)

    B, C, reduction = 2, 32, 4
    w1, w2 = make_params(k_p, C, reduction)

    # Case 1: fused single-pass path, 128-aligned spatial (H*W = 256).
    x1 = jax.random.normal(k_x1, (B, C, 16, 16), jnp.float32)
    out1 = jax.block_until_ready(se_layer(x1, w1, w2))
    assert out1.shape == x1.shape
    assert jnp.allclose(out1, se_reference(x1, w1, w2), atol=1e-5, rtol=1e-5)

    # Case 2: fused path, non-aligned spatial (H*W = 49; block == full dims).
    x2 = jax.random.normal(k_x2, (B, C, 7, 7), jnp.float32)
    out2 = jax.block_until_ready(se_layer(x2, w1, w2))
    assert out2.shape == x2.shape
    assert jnp.allclose(out2, se_reference(x2, w1, w2), atol=1e-5, rtol=1e-5)

    # Case 3: forced two-pass tiled path with a trailing partial tile
    # (H*W = 200, tile = 128 -> exercises pool tail masking + masked gate store).
    x3 = jax.random.normal(k_x3, (B, C, 10, 20), jnp.float32)
    out3 = jax.block_until_ready(
        se_layer(x3, w1, w2, force_two_pass=True, spatial_tile=128))
    assert out3.shape == x3.shape
    assert jnp.allclose(out3, se_reference(x3, w1, w2), atol=1e-5, rtol=1e-5)

    # Case 4: bf16 activations end-to-end (f32 accumulation inside the kernel).
    x4 = x1.astype(jnp.bfloat16)
    out4 = jax.block_until_ready(se_layer(x4, w1, w2))
    assert out4.dtype == jnp.bfloat16 and out4.shape == x4.shape
    assert jnp.allclose(out4.astype(jnp.float32), se_reference(x4, w1, w2),
                        atol=3e-2, rtol=3e-2)

    print("KERNEL_OK")
</pallas_src>

<mosaic_0001>
module attributes {stable_mosaic.version = 11 : i64} {
  func.func @_se_fused_kernel(%arg0: i32, %arg1: memref<1x32x256xf32, #tpu.memory_space<vmem>>, %arg2: memref<32x8xf32, #tpu.memory_space<vmem>>, %arg3: memref<32x8xf32, #tpu.memory_space<vmem>>, %arg4: memref<1x32x256xf32, #tpu.memory_space<vmem>>) attributes {dimension_semantics = [#tpu.dimension_semantics<parallel>], iteration_bounds = array<i64: 2>, scalar_prefetch = 0 : i64, scratch_operands = 0 : i64, tpu.core_type = #tpu.core_type<tc>, window_params = [{transform_indices = @transform_0, window_bounds = array<i64: 1, 32, 256>}, {pipeline_mode = #tpu.pipeline_mode<synchronous>, transform_indices = @transform_1, window_bounds = array<i64: 32, 8>}, {pipeline_mode = #tpu.pipeline_mode<synchronous>, transform_indices = @transform_2, window_bounds = array<i64: 32, 8>}, {transform_indices = @transform_3, window_bounds = array<i64: 1, 32, 256>}]} {
    %c0 = arith.constant 0 : index
    %c0_0 = arith.constant 0 : index
    %c0_1 = arith.constant 0 : index
    %0 = vector.load %arg1[%c0, %c0_0, %c0_1] : memref<1x32x256xf32, #tpu.memory_space<vmem>>, vector<1x32x256xf32>
    %1 = vector.shape_cast %0 : vector<1x32x256xf32> to vector<32x256xf32>
    %cst = arith.constant dense<0.000000e+00> : vector<32xf32>
    %2 = vector.multi_reduction <add>, %1, %cst [1] : vector<32x256xf32> to vector<32xf32>
    %3 = vector.shape_cast %2 : vector<32xf32> to vector<32x1xf32>
    %cst_2 = arith.constant 3.906250e-03 : f32
    %4 = vector.broadcast %cst_2 : f32 to vector<32x1xf32>
    %5 = arith.mulf %3, %4 : vector<32x1xf32>
    %c0_3 = arith.constant 0 : index
    %c0_4 = arith.constant 0 : index
    %6 = vector.load %arg2[%c0_3, %c0_4] : memref<32x8xf32, #tpu.memory_space<vmem>>, vector<32x8xf32>
    %7 = vector.broadcast %5 : vector<32x1xf32> to vector<32x8xf32>
    %8 = arith.mulf %6, %7 : vector<32x8xf32>
    %cst_5 = arith.constant dense<0.000000e+00> : vector<8xf32>
    %9 = vector.multi_reduction <add>, %8, %cst_5 [0] : vector<32x8xf32> to vector<8xf32>
    %10 = vector.shape_cast %9 : vector<8xf32> to vector<1x8xf32>
    %cst_6 = arith.constant 0.000000e+00 : f32
    %11 = vector.broadcast %cst_6 : f32 to vector<1x8xf32>
    %12 = arith.maximumf %10, %11 : vector<1x8xf32>
    %c0_7 = arith.constant 0 : index
    %c0_8 = arith.constant 0 : index
    %13 = vector.load %arg3[%c0_7, %c0_8] : memref<32x8xf32, #tpu.memory_space<vmem>>, vector<32x8xf32>
    %14 = vector.broadcast %12 : vector<1x8xf32> to vector<32x8xf32>
    %15 = arith.mulf %13, %14 : vector<32x8xf32>
    %cst_9 = arith.constant dense<0.000000e+00> : vector<32xf32>
    %16 = vector.multi_reduction <add>, %15, %cst_9 [1] : vector<32x8xf32> to vector<32xf32>
    %17 = vector.shape_cast %16 : vector<32xf32> to vector<32x1xf32>
    %cst_10 = arith.constant 0.000000e+00 : f32
    %18 = vector.broadcast %cst_10 : f32 to vector<32x1xf32>
    %19 = arith.subf %18, %17 : vector<32x1xf32>
    %20 = math.exp %19 : vector<32x1xf32>
    %cst_11 = arith.constant 1.000000e+00 : f32
    %21 = vector.broadcast %cst_11 : f32 to vector<32x1xf32>
    %22 = arith.addf %21, %20 : vector<32x1xf32>
    %cst_12 = arith.constant 1.000000e+00 : f32
    %23 = vector.broadcast %cst_12 : f32 to vector<32x1xf32>
    %24 = arith.divf %23, %22 : vector<32x1xf32>
    %25 = vector.broadcast %24 : vector<32x1xf32> to vector<32x256xf32>
    %26 = arith.mulf %1, %25 : vector<32x256xf32>
    %c0_13 = arith.constant 0 : index
    %c0_14 = arith.constant 0 : index
    %c0_15 = arith.constant 0 : index
    %27 = vector.load %arg4[%c0_13, %c0_14, %c0_15] : memref<1x32x256xf32, #tpu.memory_space<vmem>>, vector<1x32x256xf32>
    %28 = vector.shape_cast %27 : vector<1x32x256xf32> to vector<32x256xf32>
    %29 = vector.shape_cast %26 : vector<32x256xf32> to vector<1x32x256xf32>
    tpu.vector_store %arg4[%c0_13, %c0_14, %c0_15], %29 {strides = array<i32>} : memref<1x32x256xf32, #tpu.memory_space<vmem>>, vector<1x32x256xf32>,
    return
  }
  func.func @transform_0(%arg0: i32) -> (i32, i32, i32) {
    %c0_i32 = arith.constant 0 : i32
    %c0_i32_0 = arith.constant 0 : i32
    %c0_i32_1 = arith.constant 0 : i32
    return %arg0, %c0_i32, %c0_i32_0 : i32, i32, i32
  }
  func.func @transform_1(%arg0: i32) -> (i32, i32) {
    %c0_i32 = arith.constant 0 : i32
    %c0_i32_0 = arith.constant 0 : i32
    %c0_i32_1 = arith.constant 0 : i32
    return %c0_i32, %c0_i32_0 : i32, i32
  }
  func.func @transform_2(%arg0: i32) -> (i32, i32) {
    %c0_i32 = arith.constant 0 : i32
    %c0_i32_0 = arith.constant 0 : i32
    %c0_i32_1 = arith.constant 0 : i32
    return %c0_i32, %c0_i32_0 : i32, i32
  }
  func.func @transform_3(%arg0: i32) -> (i32, i32, i32) {
    %c0_i32 = arith.constant 0 : i32
    %c0_i32_0 = arith.constant 0 : i32
    %c0_i32_1 = arith.constant 0 : i32
    return %arg0, %c0_i32, %c0_i32_0 : i32, i32, i32
  }
}

</mosaic_0001>

<llo_original>
// kernel: tpu_custom_call.1
$region0: #{tpu_custom_call.1}
  #allocation0 [shape = 'u32[]', space=smem, size = 0x4, offset = 0x4, fixed_abs, tag = 'smem constant byte address 0x4 - core index']
  #allocation1 [shape = 'u32[72,128]{1,0:T(1,128)}', space=vmem, size = 0x9000, scoped, tag = 'internal scratch']
  %s0 = inlined_call_operand.hbm [shape: f32[2,32,256], index: 0, kind: input, shape index: {}]
  %s1 = inlined_call_operand.vmem [shape: f32[32,8], index: 1, kind: input, shape index: {}]
  %s2 = inlined_call_operand.vmem [shape: f32[32,8], index: 2, kind: input, shape index: {}]
  %s3 = inlined_call_operand.hbm [shape: f32[2,32,256], index: 3, kind: output, shape index: {}]
  %s4 = sld [smem:[#allocation0]]
  $region49: #{tpu_custom_call.1} parent=0
    _
  %s6 = ssub.s32 1, %s4
  %s7 = scalar_select 0, %s6, %s4
  $region1: #{tpu_custom_call.1} parent=0
    #allocation2 [shape = 'u8[65536]{0}', space=vmem, size = 0x10000, scoped, tag = 'input window, operand 0']
    #allocation3 [shape = 's32[2]{0}', space=sflag, size = 0x8, scoped, tag = 'scoped memory for tpu_custom_call.1']
    #allocation4 [shape = 's32[2]{0}', space=sflag, size = 0x8, scoped, tag = 'scoped memory for tpu_custom_call.1']
    #allocation5 [shape = 'u8[65536]{0}', space=vmem, size = 0x10000, scoped, tag = 'output window, operand 0']
    %8 = vsyncpa [#allocation3], 0
    %s9 = scalar_lea.sflag [#allocation3], 1
    %10 = vsyncpa %s9, 0
    %11 = vsyncpa [#allocation4], 0
    %s12 = scalar_lea.sflag [#allocation4], 1
    %13 = vsyncpa %s12, 0
    loop: start=0, step=1, limit=4
    $region2: #{tpu_custom_call.1} parent=1 // loop_pre_header
      _
    $region3: #{tpu_custom_call.1} parent=1 // loop_header
      %s15 = sphi 0, %s19
      %p16 = scmp.ge.s32.totalorder %s15, 4
      %s25 = sphi 0, %s27
      %s28 = sphi 0, %s25
      %s29 = sphi 0, %s28
      %s45 = sphi 0, %s29
      %s49 = sphi 0, %s49
      %s51 = sphi 0, %s49
      %s52 = sphi 0, %s51
      %s66 = sphi 0, %s52
      %s70 = sphi 0, %s70
      %s72 = sphi 0, %s70
      %s73 = sphi 0, %s72
      %s87 = sphi 0, %s73
      %s93 = sphi 0, %s95
      %s96 = sphi 0, %s93
      %s97 = sphi 0, %s96
      %s113 = sphi 0, %s97
    $region4: #{tpu_custom_call.1} parent=1 // loop_header_branch
      %18 = sbr.rel (%p16) target = $region8
    $region5: #{tpu_custom_call.1} parent=1 // loop_body
      %s20 = ssub.s32 %s15, 1
      %s21 = ssub.s32 %s15, 2
      %s22 = sadd.s32 %s15, 1
      %s23 = ssub.s32 %s15, %s22
      %p24 = scmp.eq.s32.totalorder %s23, 0
      %s26 = sadd.s32 %s25, 1
      %s27 = scalar_select %p24, %s25, %s26
      %p30 = pneg %p24
      %p31 = scmp.eq.s32.totalorder %s15, 1
      %p32 = por %p30, %p31
      %p33 = scmp.ne.s32.totalorder %s25, %s28
      %p34 = scmp.eq.s32.totalorder %s15, 0
      %p35 = por %p33, %p34
      %p36 = scmp.ne.s32.totalorder %s25, %s28
      %p37 = scmp.eq.s32.totalorder %s20, 1
      %p38 = por %p36, %p37
      %p39 = scmp.ne.s32.totalorder %s28, %s29
      %p40 = scmp.eq.s32.totalorder %s20, 0
      %p41 = por %p39, %p40
      %p42 = scmp.ne.s32.totalorder %s28, %s29
      %p43 = scmp.eq.s32.totalorder %s21, 1
      %p44 = por %p42, %p43
      %p46 = scmp.ne.s32.totalorder %s29, %s45
      %p47 = scmp.eq.s32.totalorder %s21, 0
      %p48 = por %p46, %p47
      %s50 = sadd.s32 %s49, 1
      %p53 = scmp.eq.s32.totalorder %s15, 1
      %p54 = scmp.ne.s32.totalorder %s49, %s51
      %p55 = scmp.eq.s32.totalorder %s15, 0
      %p56 = por %p54, %p55
      %p57 = scmp.ne.s32.totalorder %s49, %s51
      %p58 = scmp.eq.s32.totalorder %s20, 1
      %p59 = por %p57, %p58
      %p60 = scmp.ne.s32.totalorder %s51, %s52
      %p61 = scmp.eq.s32.totalorder %s20, 0
      %p62 = por %p60, %p61
      %p63 = scmp.ne.s32.totalorder %s51, %s52
      %p64 = scmp.eq.s32.totalorder %s21, 1
      %p65 = por %p63, %p64
      %p67 = scmp.ne.s32.totalorder %s52, %s66
      %p68 = scmp.eq.s32.totalorder %s21, 0
      %p69 = por %p67, %p68
      %s71 = sadd.s32 %s70, 1
      %p74 = scmp.eq.s32.totalorder %s15, 1
      %p75 = scmp.ne.s32.totalorder %s70, %s72
      %p76 = scmp.eq.s32.totalorder %s15, 0
      %p77 = por %p75, %p76
      %p78 = scmp.ne.s32.totalorder %s70, %s72
      %p79 = scmp.eq.s32.totalorder %s20, 1
      %p80 = por %p78, %p79
      %p81 = scmp.ne.s32.totalorder %s72, %s73
      %p82 = scmp.eq.s32.totalorder %s20, 0
      %p83 = por %p81, %p82
      %p84 = scmp.ne.s32.totalorder %s72, %s73
      %p85 = scmp.eq.s32.totalorder %s21, 1
      %p86 = por %p84, %p85
      %p88 = scmp.ne.s32.totalorder %s73, %s87
      %p89 = scmp.eq.s32.totalorder %s21, 0
      %p90 = por %p88, %p89
      %s91 = ssub.s32 %s15, %s22
      %p92 = scmp.eq.s32.totalorder %s91, 0
      %s94 = sadd.s32 %s93, 1
      %s95 = scalar_select %p92, %s93, %s94
      %p98 = pneg %p92
      %p99 = scmp.eq.s32.totalorder %s15, 1
      %p100 = por %p98, %p99
      %p101 = scmp.ne.s32.totalorder %s93, %s96
      %p102 = scmp.eq.s32.totalorder %s15, 0
      %p103 = por %p101, %p102
      %p104 = scmp.ne.s32.totalorder %s93, %s96
      %p105 = scmp.eq.s32.totalorder %s20, 1
      %p106 = por %p104, %p105
      %p107 = scmp.ne.s32.totalorder %s96, %s97
      %p108 = scmp.eq.s32.totalorder %s20, 0
      %p109 = por %p107, %p108
      %p110 = scmp.ne.s32.totalorder %s96, %s97
      %p111 = scmp.eq.s32.totalorder %s21, 1
      %p112 = por %p110, %p111
      %p114 = scmp.ne.s32.totalorder %s97, %s113
      %p115 = scmp.eq.s32.totalorder %s21, 0
      %p116 = por %p114, %p115
      %p117 = scmp.le.s32.totalorder 1, %s15
      %p118 = scmp.lt.s32.totalorder %s15, 3
      %p119 = pnand %p117, %p118
      %p120 = pneg %p119
      // Predicated region
      $region9: #{tpu_custom_call.1} parent=5 // pred_check
        _
      $region10: #{tpu_custom_call.1} parent=5 // pred_check_branch
        %122 = sbr.rel (%p119) target = $region12
      $region11: #{tpu_custom_call.1} parent=5 // pred_region
        %s123 = ssub.s32 %s15, 1
        // Predicated region
        $region13: #{tpu_custom_call.1} parent=11 // pred_check
          %p124 = pneg %p62
        $region14: #{tpu_custom_call.1} parent=11 // pred_check_branch
          %126 = sbr.rel (%p124) target = $region16
        $region15: #{tpu_custom_call.1} parent=11 // pred_region
          _
        $region16: #{tpu_custom_call.1} parent=11 // pred_fallthru
          _
        // Predicated region
        $region17: #{tpu_custom_call.1} parent=11 // pred_check
          %p127 = pneg %p83
        $region18: #{tpu_custom_call.1} parent=11 // pred_check_branch
          %129 = sbr.rel (%p127) target = $region20
        $region19: #{tpu_custom_call.1} parent=11 // pred_region
          _
        $region20: #{tpu_custom_call.1} parent=11 // pred_fallthru
          _
      $region12: #{tpu_custom_call.1} parent=5 // pred_fallthru
        _
      %p130 = scmp.lt.s32.totalorder %s15, 2
      // Predicated region
      $region21: #{tpu_custom_call.1} parent=5 // pred_check
        %p131 = pneg %p130
      $region22: #{tpu_custom_call.1} parent=5 // pred_check_branch
        %133 = sbr.rel (%p131) target = $region24
      $region23: #{tpu_custom_call.1} parent=5 // pred_region
        // Predicated region
        $region25: #{tpu_custom_call.1} parent=23 // pred_check
          %p134 = pneg %p35
        $region26: #{tpu_custom_call.1} parent=23 // pred_check_branch
          %136 = sbr.rel (%p134) target = $region28
        $region27: #{tpu_custom_call.1} parent=23 // pred_region
          %s137 = sand.u32 %s25, 1
          %s138 = scalar_lea.sflag [#allocation3], %s137
          %s139 = sand.u32 %s25, 1
          %s140 = smul.addr %s139, 64
          %s141 = scalar_lea.vmem [#allocation2], %s140
          %143 = vsyncadd %s138, 0
          %s144 = smul.addr %s15, 8
          %s145 = smul.addr %s144, 8
          %s146 = scalar_lea.hbm %s0, %s145
          %s147 = sshll.u32 %s146, 4
          %s148 = int_to_ptr.hbm [resolvable:$true] %s147
          %s149 = sshll.u32 %s141, 4
          %s150 = int_to_ptr.vmem [resolvable:$true] %s149
          %155 = dma.hbm_to_vmem [thread:$0]  %s148, 1024, %s150, %s138, 256, 256, 16
        $region28: #{tpu_custom_call.1} parent=23 // pred_fallthru
          _
      $region24: #{tpu_custom_call.1} parent=5 // pred_fallthru
        _
      %p156 = scmp.le.s32.totalorder 1, %s15
      %p157 = scmp.lt.s32.totalorder %s15, 3
      %p158 = pnand %p156, %p157
      %p159 = pneg %p158
      // Predicated region
      $region29: #{tpu_custom_call.1} parent=5 // pred_check
        _
      $region30: #{tpu_custom_call.1} parent=5 // pred_check_branch
        %161 = sbr.rel (%p158) target = $region32
      $region31: #{tpu_custom_call.1} parent=5 // pred_region
        %s162 = ssub.s32 %s15, 1
        %s163 = sand.u32 %s28, 1
        %s164 = scalar_lea.sflag [#allocation3], %s163
        %s165 = sand.u32 %s28, 1
        %s166 = smul.addr %s165, 64
        %s167 = scalar_lea.vmem [#allocation2], %s166
        // Predicated region
        $region33: #{tpu_custom_call.1} parent=31 // pred_check
          %p168 = pneg %p41
        $region34: #{tpu_custom_call.1} parent=31 // pred_check_branch
          %170 = sbr.rel (%p168) target = $region36
        $region35: #{tpu_custom_call.1} parent=31 // pred_region
          %172 = dma.done %s164, 1024
        $region36: #{tpu_custom_call.1} parent=31 // pred_fallthru
          _
        %s173 = sand.u32 %s28, 1
        %s174 = scalar_lea.sflag [#allocation3], %s173
        %s175 = sand.u32 %s28, 1
        %s176 = smul.addr %s175, 64
        %s177 = scalar_lea.vmem [#allocation2], %s176
        %p178 = pneg %p41
        %p179 = pneg %p38
        %p180 = pneg %p62
        %p181 = pneg %p59
        %p182 = pneg %p83
        %p183 = pneg %p80
        %p184 = pneg %p109
        %p185 = pneg %p106
        %s186 = sand.u32 %s96, 1
        %s187 = scalar_lea.sflag [#allocation4], %s186
        %s188 = sand.u32 %s96, 1
        %s189 = smul.addr %s188, 64
        %s190 = scalar_lea.vmem [#allocation5], %s189
        %v191 = vld [vmem:[%s167] sm:$0xff]
        %v192 = vld [vmem:[%s167 + $0x8] sm:$0xff]
        %v193 = vld [vmem:[%s167 + $0x10] sm:$0xff]
        %v194 = vld [vmem:[%s167 + $0x18] sm:$0xff]
        %v195 = vld [vmem:[%s167 + $0x20] sm:$0xff]
        %v196 = vld [vmem:[%s167 + $0x28] sm:$0xff]
        %v197 = vld [vmem:[%s167 + $0x30] sm:$0xff]
        %v198 = vld [vmem:[%s167 + $0x38] sm:$0xff]
        %v199 = vadd.f32 %v191, %v192
        %200 = vadd.xlane.f32.xlu0 %v199
        %v201 = vpop.xlane.xlu0 %200
        %v202 = vadd.f32 %v193, %v194
        %203 = vadd.xlane.f32.xlu0 %v202
        %v204 = vpop.xlane.xlu0 %203
        %v205 = vadd.f32 %v195, %v196
        %206 = vadd.xlane.f32.xlu0 %v205
        %v207 = vpop.xlane.xlu0 %206
        %v208 = vadd.f32 %v197, %v198
        %209 = vadd.xlane.f32.xlu0 %v208
        %v210 = vpop.xlane.xlu0 %209
        %v211 = vmul.f32 %v201, 0.00390625
        %v212 = vmul.f32 %v204, 0.00390625
        %v213 = vmul.f32 %v207, 0.00390625
        %v214 = vmul.f32 %v210, 0.00390625
        %v215 = vld [vmem:[%s1] sm:$0xff]
        %v216 = vld [vmem:[%s1 + $0x8] sm:$0xff]
        %v217 = vld [vmem:[%s1 + $0x10] sm:$0xff]
        %v218 = vld [vmem:[%s1 + $0x18] sm:$0xff]
        %v219 = vmul.f32 %v215, %v211
        %v220 = vmul.f32 %v216, %v212
        %v221 = vmul.f32 %v217, %v213
        %v222 = vmul.f32 %v218, %v214
        %vm223 = vcmask 64512
        %v224 = vsel %vm223, %v219, 0.0
        %v225 = vsel %vm223, %v220, 0.0
        %v226 = vadd.f32 %v224, %v225
        %v227 = vsel %vm223, %v221, 0.0
        %v228 = vadd.f32 %v226, %v227
        %v229 = vsel %vm223, %v222, 0.0
        %v230 = vadd.f32 %v228, %v229
        %v231 = vrot.slane %v230, 4
        %v232 = vadd.f32 %v230, %v231
        %v233 = vrot.slane %v232, 2
        %v234 = vadd.f32 %v232, %v233
        %v235 = vrot.slane %v234, 1
        %v236 = vadd.f32 %v234, %v235
        %v237 = vmax.f32 %v236, 0.0
        %v238 = vld [vmem:[%s2] sm:$0xff]
        %v239 = vld [vmem:[%s2 + $0x8] sm:$0xff]
        %v240 = vld [vmem:[%s2 + $0x10] sm:$0xff]
        %v241 = vld [vmem:[%s2 + $0x18] sm:$0xff]
        %v242 = vmul.f32 %v238, %v237
        %v243 = vmul.f32 %v239, %v237
        %v244 = vmul.f32 %v240, %v237
        %v245 = vmul.f32 %v241, %v237
        %v246 = vsel %vm223, %v242, 0.0
        %247 = vadd.xlane.f32.xlu0 %v246
        %v248 = vpop.xlane.xlu0 %247
        %v249 = vsel %vm223, %v243, 0.0
        %250 = vadd.xlane.f32.xlu0 %v249
        %v251 = vpop.xlane.xlu0 %250
        %v252 = vsel %vm223, %v244, 0.0
        %253 = vadd.xlane.f32.xlu0 %v252
        %v254 = vpop.xlane.xlu0 %253
        %v255 = vsel %vm223, %v245, 0.0
        %256 = vadd.xlane.f32.xlu0 %v255
        %v257 = vpop.xlane.xlu0 %256
        %v258 = vsub.f32 0.0, %v248
        %v259 = vsub.f32 0.0, %v251
        %v260 = vsub.f32 0.0, %v254
        %v261 = vsub.f32 0.0, %v257
        %v262 = vmul.f32 %v258, 1.442695
        %v263 = vpow.pop %v262
        %v264 = vmul.f32 %v259, 1.442695
        %v265 = vpow.pop %v264
        %v266 = vmul.f32 %v260, 1.442695
        %v267 = vpow.pop %v266
        %v268 = vmul.f32 %v261, 1.442695
        %v269 = vpow.pop %v268
        %v270 = vadd.f32 %v263, 1.0
        %v271 = vadd.f32 %v265, 1.0
        %v272 = vadd.f32 %v267, 1.0
        %v273 = vadd.f32 %v269, 1.0
        %v274 = vrcp.pop %v270
        %v275 = vmul.f32 %v270, %v274
        %v276 = vsub.f32 1.0, %v275
        %v277 = vmul.f32 %v274, %v276
        %v278 = vadd.f32 %v274, %v277
        %vm279 = vweird.f32 %v270
        %vm280 = vweird.f32 %v274
        %vm281 = vmor %vm279, %vm280
        %v282 = vsel %vm281, %v274, %v278
        %v283 = vand.u32 2147483647, %v270
        %vm284 = vcmp.eq.f32.partialorder %v283, 8.507059e+37
        %v285 = vand.u32 %v270, 2147483648
        %v286 = vor.u32 1.1754944e-38, %v285
        %v287 = vsel %vm284, %v286, %v282
        %v288 = vmul.f32 1.0, %v287
        %v289 = vrcp.pop %v271
        %v290 = vmul.f32 %v271, %v289
        %v291 = vsub.f32 1.0, %v290
        %v292 = vmul.f32 %v289, %v291
        %v293 = vadd.f32 %v289, %v292
        %vm294 = vweird.f32 %v271
        %vm295 = vweird.f32 %v289
        %vm296 = vmor %vm294, %vm295
        %v297 = vsel %vm296, %v289, %v293
        %v298 = vand.u32 2147483647, %v271
        %vm299 = vcmp.eq.f32.partialorder %v298, 8.507059e+37
        %v300 = vand.u32 %v271, 2147483648
        %v301 = vor.u32 1.1754944e-38, %v300
        %v302 = vsel %vm299, %v301, %v297
        %v303 = vmul.f32 1.0, %v302
        %v304 = vrcp.pop %v272
        %v305 = vmul.f32 %v272, %v304
        %v306 = vsub.f32 1.0, %v305
        %v307 = vmul.f32 %v304, %v306
        %v308 = vadd.f32 %v304, %v307
        %vm309 = vweird.f32 %v272
        %vm310 = vweird.f32 %v304
        %vm311 = vmor %vm309, %vm310
        %v312 = vsel %vm311, %v304, %v308
        %v313 = vand.u32 2147483647, %v272
        %vm314 = vcmp.eq.f32.partialorder %v313, 8.507059e+37
        %v315 = vand.u32 %v272, 2147483648
        %v316 = vor.u32 1.1754944e-38, %v315
        %v317 = vsel %vm314, %v316, %v312
        %v318 = vmul.f32 1.0, %v317
        %v319 = vrcp.pop %v273
        %v320 = vmul.f32 %v273, %v319
        %v321 = vsub.f32 1.0, %v320
        %v322 = vmul.f32 %v319, %v321
        %v323 = vadd.f32 %v319, %v322
        %vm324 = vweird.f32 %v273
        %vm325 = vweird.f32 %v319
        %vm326 = vmor %vm324, %vm325
        %v327 = vsel %vm326, %v319, %v323
        %v328 = vand.u32 2147483647, %v273
        %vm329 = vcmp.eq.f32.partialorder %v328, 8.507059e+37
        %v330 = vand.u32 %v273, 2147483648
        %v331 = vor.u32 1.1754944e-38, %v330
        %v332 = vsel %vm329, %v331, %v327
        %v333 = vmul.f32 1.0, %v332
        %v334 = vmul.f32 %v191, %v288
        %v335 = vmul.f32 %v192, %v288
        %v336 = vmul.f32 %v193, %v303
        %v337 = vmul.f32 %v194, %v303
        %v338 = vmul.f32 %v195, %v318
        %v339 = vmul.f32 %v196, %v318
        %v340 = vmul.f32 %v197, %v333
        %v341 = vmul.f32 %v198, %v333
        %342 = vst [vmem:[%s190] sm:$0xff] %v334
        %343 = vst [vmem:[%s190 + $0x8] sm:$0xff] %v335
        %344 = vst [vmem:[%s190 + $0x10] sm:$0xff] %v336
        %345 = vst [vmem:[%s190 + $0x18] sm:$0xff] %v337
        %346 = vst [vmem:[%s190 + $0x20] sm:$0xff] %v338
        %347 = vst [vmem:[%s190 + $0x28] sm:$0xff] %v339
        %348 = vst [vmem:[%s190 + $0x30] sm:$0xff] %v340
        %349 = vst [vmem:[%s190 + $0x38] sm:$0xff] %v341
        %s350 = sand.u32 %s96, 1
        %s351 = scalar_lea.sflag [#allocation4], %s350
        %s352 = sand.u32 %s96, 1
        %s353 = smul.addr %s352, 64
        %s354 = scalar_lea.vmem [#allocation5], %s353
        // Predicated region
        $region37: #{tpu_custom_call.1} parent=31 // pred_check
          %p355 = pneg %p106
        $region38: #{tpu_custom_call.1} parent=31 // pred_check_branch
          %357 = sbr.rel (%p355) target = $region40
        $region39: #{tpu_custom_call.1} parent=31 // pred_region
          %359 = vsyncadd %s351, 0
          %s360 = smul.addr %s20, 8
          %s361 = smul.addr %s360, 8
          %s362 = scalar_lea.hbm %s3, %s361
          %s363 = sshll.u32 %s354, 4
          %s364 = int_to_ptr.vmem [resolvable:$true] %s363
          %s365 = sshll.u32 %s362, 4
          %s366 = int_to_ptr.hbm [resolvable:$true] %s365
          %371 = dma.vmem_to_hbm [thread:$0]  %s364, 1024, %s366, %s351, 256, 256, 16
        $region40: #{tpu_custom_call.1} parent=31 // pred_fallthru
          _
      $region32: #{tpu_custom_call.1} parent=5 // pred_fallthru
        _
      %p372 = scmp.le.s32.totalorder 2, %s15
      // Predicated region
      $region41: #{tpu_custom_call.1} parent=5 // pred_check
        %p373 = pneg %p372
      $region42: #{tpu_custom_call.1} parent=5 // pred_check_branch
        %375 = sbr.rel (%p373) target = $region44
      $region43: #{tpu_custom_call.1} parent=5 // pred_region
        %s376 = ssub.s32 %s15, 2
        // Predicated region
        $region45: #{tpu_custom_call.1} parent=43 // pred_check
          %p377 = pneg %p112
        $region46: #{tpu_custom_call.1} parent=43 // pred_check_branch
          %379 = sbr.rel (%p377) target = $region48
        $region47: #{tpu_custom_call.1} parent=43 // pred_region
          %s380 = sand.u32 %s97, 1
          %s381 = scalar_lea.sflag [#allocation4], %s380
          %s382 = sand.u32 %s97, 1
          %s383 = smul.addr %s382, 64
          %s384 = scalar_lea.vmem [#allocation5], %s383
          %386 = dma.done %s381, 1024
        $region48: #{tpu_custom_call.1} parent=43 // pred_fallthru
          _
      $region44: #{tpu_custom_call.1} parent=5 // pred_fallthru
        _
    $region6: #{tpu_custom_call.1} parent=1 // loop_footer
      %s19 = sadd.s32 1, %s15
    $region7: #{tpu_custom_call.1} parent=1 // loop_footer_branch
      %14 = sbr.rel target = $region3
    $region8: #{tpu_custom_call.1} parent=1 // loop_exit
      _
    %387 = vsyncpa [#allocation3], 1
    %s388 = scalar_lea.sflag [#allocation3], 1
    %389 = vsyncpa %s388, 1
    %390 = vsyncpa [#allocation4], 1
    %s391 = scalar_lea.sflag [#allocation4], 1
    %392 = vsyncpa %s391, 1

</llo_original>
